<compile_context>
chip_gen: v5e
topology: v5e:2x2
jax: 0.10.0
libtpu: 0.0.40
codegen_flags: <defaults>
</compile_context>

<pallas_src>
import jax
import jax.numpy as jnp
import numpy as np
from jax.experimental import pallas as pl
from jax.experimental.pallas import tpu as pltpu

# ---------------- problem sizes (small, TPU-tile friendly) ----------------
N = 256            # number of cells          (multiple of 128 -> lane dense)
T = 8              # num_area_types           (multiple of 8)
NETS = 16          # synthetic nets           (multiple of 8)
PINS = 128         # max pins per net (padded, lane dense)


def place_obj_kernel(pins_ref, mask_ref, pos_ref, at_w_ref, lambdas_ref,
                     cs_ref, gamma_ref,
                     obj_ref, wl_ref, phi_ref, dens_ref):
    """Single-block kernel: WA wirelength (x/y stacked) + density potential + penalty combine."""
    inv_g = 1.0 / gamma_ref[0, 0]
    neg_big = jnp.float32(-1e30)
    R = 2 * NETS                                            # stacked x/y net rows

    v = pins_ref[...]                                       # (2*NETS, PINS): x nets then y nets
    valid = mask_ref[...] > 0.0                             # hoisted; reused below
    valid2 = jnp.concatenate([valid, valid], axis=0)        # (4*NETS, PINS)
    vpm = jnp.concatenate([v, -v], axis=0)                  # (4*NETS, PINS)

    # One XLU max covers per-net max (rows < 2*NETS) and -min (rows >= 2*NETS).
    mx = jnp.max(jnp.where(valid2, vpm, neg_big), axis=-1, keepdims=True)    # (4*NETS, 1)

    # Exponent args; invalid lanes get -1e30 so exp() is exactly 0 (no inf*0 NaN path).
    args = jnp.where(valid2, (vpm - mx) * inv_g, neg_big)
    e = jnp.exp(args)                                       # single EUP exp site, (4*NETS, PINS)

    v2 = jnp.concatenate([v, v], axis=0)                    # (4*NETS, PINS)
    big = jnp.concatenate([e, v2 * e], axis=0)              # (8*NETS, PINS)
    s = jnp.sum(big, axis=-1, keepdims=True)                # ONE cross-lane reduction, (8*NETS, 1)
    s_pos, s_neg = s[0 * R:1 * R], s[1 * R:2 * R]
    sv_pos, sv_neg = s[2 * R:3 * R], s[3 * R:4 * R]
    wl_per = sv_pos / s_pos - sv_neg / s_neg                # (2*NETS, 1): WA_x rows then WA_y rows
    wirelength = jnp.sum(wl_per)
    wl_ref[0, 0] = wirelength

    # density potential per area type: phi_t = sum_i at_w[t, i] * (x_i^2 + y_i^2), on the MXU
    x = pos_ref[0:1, :]
    y = pos_ref[1:2, :]
    r2 = x * x + y * y                                      # (1, N)
    phi = jax.lax.dot_general(r2, at_w_ref[...],
                              (((1,), (1,)), ((), ())),
                              preferred_element_type=jnp.float32)            # (1, T)
    phi_ref[...] = phi

    # density = phi + 0.5 * cs * phi^2 ; obj = WL + sum(lambdas * density)
    cs = cs_ref[0, 0]
    dens = phi + 0.5 * cs * phi * phi
    dens_ref[...] = dens
    obj_ref[0, 0] = wirelength + jnp.sum(lambdas_ref[...] * dens)


@jax.jit
def place_model_forward(pos, pin2cell, pin_mask, at_weights, lambdas, cs, gamma):
    """Jitted glue: lane-dense (2, N) positions, fused x/y-stacked pin gather, one pallas_call."""
    pos2n = pos.T.astype(jnp.float32)                            # (2, N), lane dense
    # single fused gather for both coordinates; rows 0..NETS-1 = x pins, NETS..2*NETS-1 = y pins
    pins = pos2n[:, pin2cell].reshape(2 * NETS, PINS)            # (2*NETS, PINS)
    mask2 = jnp.concatenate([pin_mask, pin_mask], axis=0).astype(jnp.float32)
    lam = lambdas.reshape(1, T).astype(jnp.float32)              # lane-dense multipliers
    cs_arr = jnp.asarray(cs, jnp.float32).reshape(1, 1)
    gamma_arr = jnp.asarray(gamma, jnp.float32).reshape(1, 1)

    vmem = pl.BlockSpec(memory_space=pltpu.MemorySpace.VMEM)
    smem = pl.BlockSpec(memory_space=pltpu.MemorySpace.SMEM)

    obj, wl, phi, dens = pl.pallas_call(
        place_obj_kernel,
        out_shape=(
            jax.ShapeDtypeStruct((1, 1), jnp.float32),   # objective        (SMEM scalar)
            jax.ShapeDtypeStruct((1, 1), jnp.float32),   # wirelength term  (SMEM scalar)
            jax.ShapeDtypeStruct((1, T), jnp.float32),   # phi              (lane axis)
            jax.ShapeDtypeStruct((1, T), jnp.float32),   # density          (lane axis)
        ),
        in_specs=[vmem, vmem, vmem, vmem, vmem, smem, smem],
        out_specs=(smem, smem, vmem, vmem),
    )(pins, mask2, pos2n, at_weights.astype(jnp.float32), lam, cs_arr, gamma_arr)
    return obj[0, 0], wl[0, 0], phi[0], dens[0]


def reference_forward(pos, pin2cell, pin_mask, at_weights, lambdas, cs, gamma):
    """Pure-JAX reference of the same math (for a correctness check)."""
    px = pos[pin2cell, 0]
    py = pos[pin2cell, 1]
    m = pin_mask

    def wa(v):
        vmax = jnp.max(jnp.where(m > 0, v, -1e30), axis=-1, keepdims=True)
        vmin = jnp.min(jnp.where(m > 0, v, 1e30), axis=-1, keepdims=True)
        ep = jnp.exp((v - vmax) / gamma) * m
        en = jnp.exp((vmin - v) / gamma) * m
        return (jnp.sum(v * ep, -1) / jnp.sum(ep, -1)
                - jnp.sum(v * en, -1) / jnp.sum(en, -1))

    wl = jnp.sum(wa(px) + wa(py))
    r2 = pos[:, 0] ** 2 + pos[:, 1] ** 2
    phi = at_weights @ r2
    dens = phi + 0.5 * cs * phi ** 2
    return wl + jnp.sum(lambdas[:, 0] * dens), wl


if __name__ == "__main__":
    key = jax.random.PRNGKey(0)
    k1, k2, k3, k4, k5 = jax.random.split(key, 5)

    # cell positions (N, 2) on a 64x64 placement region
    pos = jax.random.uniform(k1, (N, 2), jnp.float32, 0.0, 64.0)

    # synthetic net structure: each net connects PINS cells (index map), with a
    # validity mask giving each net between 3 and PINS real pins.
    pin2cell = jax.random.randint(k2, (NETS, PINS), 0, N)
    pins_per_net = jax.random.randint(k3, (NETS, 1), 3, PINS + 1)
    pin_mask = (jnp.arange(PINS)[None, :] < pins_per_net).astype(jnp.float32)

    # area-type membership weights (each cell belongs to one of T types, weight = cell area)
    cell_type = jax.random.randint(k4, (N,), 0, T)
    cell_area = jax.random.uniform(k5, (N,), jnp.float32, 0.5, 2.0)
    at_weights = (jax.nn.one_hot(cell_type, T, dtype=jnp.float32).T
                  * cell_area[None, :])                      # (T, N)

    # multipliers
    lambdas = (0.1 * (1.0 + jnp.arange(T, dtype=jnp.float32))).reshape(T, 1)
    cs = 0.5
    gamma = 4.0

    obj, wl, phi, dens = place_model_forward(
        pos, pin2cell, pin_mask, at_weights, lambdas, cs, gamma)
    obj = jax.block_until_ready(obj)

    obj_ref, wl_ref = reference_forward(
        pos, pin2cell, pin_mask, at_weights, lambdas, cs, gamma)
    np.testing.assert_allclose(np.asarray(obj), np.asarray(obj_ref), rtol=5e-4, atol=5e-4)
    np.testing.assert_allclose(np.asarray(wl), np.asarray(wl_ref), rtol=5e-4, atol=5e-4)

    print("KERNEL_OK")
</pallas_src>

<mosaic_0001>
module attributes {stable_mosaic.version = 11 : i64} {
  func.func @place_obj_kernel(%arg0: memref<32x128xf32, #tpu.memory_space<vmem>>, %arg1: memref<32x128xf32, #tpu.memory_space<vmem>>, %arg2: memref<2x256xf32, #tpu.memory_space<vmem>>, %arg3: memref<8x256xf32, #tpu.memory_space<vmem>>, %arg4: memref<1x8xf32, #tpu.memory_space<vmem>>, %arg5: memref<1x1xf32, #tpu.memory_space<smem>>, %arg6: memref<1x1xf32, #tpu.memory_space<smem>>, %arg7: memref<1x1xf32, #tpu.memory_space<smem>>, %arg8: memref<1x1xf32, #tpu.memory_space<smem>>, %arg9: memref<1x8xf32, #tpu.memory_space<vmem>>, %arg10: memref<1x8xf32, #tpu.memory_space<vmem>>) attributes {dimension_semantics = [], scalar_prefetch = 0 : i64, scratch_operands = 0 : i64, tpu.core_type = #tpu.core_type<tc>} {
    %c0 = arith.constant 0 : index
    %c0_0 = arith.constant 0 : index
    %0 = memref.load %arg6[%c0, %c0_0] : memref<1x1xf32, #tpu.memory_space<smem>>
    %cst = arith.constant 1.000000e+00 : f32
    %1 = arith.divf %cst, %0 : f32
    %c0_1 = arith.constant 0 : index
    %c0_2 = arith.constant 0 : index
    %2 = vector.load %arg0[%c0_1, %c0_2] : memref<32x128xf32, #tpu.memory_space<vmem>>, vector<32x128xf32>
    %c0_3 = arith.constant 0 : index
    %c0_4 = arith.constant 0 : index
    %3 = vector.load %arg1[%c0_3, %c0_4] : memref<32x128xf32, #tpu.memory_space<vmem>>, vector<32x128xf32>
    %cst_5 = arith.constant 0.000000e+00 : f32
    %4 = vector.broadcast %cst_5 : f32 to vector<32x128xf32>
    %5 = arith.cmpf ogt, %3, %4 : vector<32x128xf32>
    %6 = tpu.concatenate %5, %5 in 0 : vector<32x128xi1>, vector<32x128xi1> -> vector<64x128xi1>
    %cst_6 = arith.constant 0.000000e+00 : f32
    %7 = vector.broadcast %cst_6 : f32 to vector<32x128xf32>
    %8 = arith.subf %7, %2 : vector<32x128xf32>
    %9 = tpu.concatenate %2, %8 in 0 : vector<32x128xf32>, vector<32x128xf32> -> vector<64x128xf32>
    %cst_7 = arith.constant -1.000000e+30 : f32
    %10 = vector.broadcast %cst_7 : f32 to vector<64x128xf32>
    %11 = arith.select %6, %9, %10 : vector<64x128xi1>, vector<64x128xf32>
    %cst_8 = arith.constant dense<0xFF800000> : vector<64xf32>
    %12 = vector.multi_reduction <maximumf>, %11, %cst_8 [1] : vector<64x128xf32> to vector<64xf32>
    %13 = vector.shape_cast %12 : vector<64xf32> to vector<64x1xf32>
    %14 = vector.broadcast %13 : vector<64x1xf32> to vector<64x128xf32>
    %15 = arith.subf %9, %14 : vector<64x128xf32>
    %16 = vector.broadcast %1 : f32 to vector<64x128xf32>
    %17 = arith.mulf %15, %16 : vector<64x128xf32>
    %cst_9 = arith.constant -1.000000e+30 : f32
    %18 = vector.broadcast %cst_9 : f32 to vector<64x128xf32>
    %19 = arith.select %6, %17, %18 : vector<64x128xi1>, vector<64x128xf32>
    %20 = math.exp %19 : vector<64x128xf32>
    %21 = tpu.concatenate %2, %2 in 0 : vector<32x128xf32>, vector<32x128xf32> -> vector<64x128xf32>
    %22 = arith.mulf %21, %20 : vector<64x128xf32>
    %23 = tpu.concatenate %20, %22 in 0 : vector<64x128xf32>, vector<64x128xf32> -> vector<128x128xf32>
    %cst_10 = arith.constant dense<0.000000e+00> : vector<128xf32>
    %24 = vector.multi_reduction <add>, %23, %cst_10 [1] : vector<128x128xf32> to vector<128xf32>
    %25 = vector.shape_cast %24 : vector<128xf32> to vector<128x1xf32>
    %26 = vector.extract_strided_slice %25 {offsets = [0, 0], sizes = [32, 1], strides = [1, 1]} : vector<128x1xf32> to vector<32x1xf32>
    %27 = vector.extract_strided_slice %25 {offsets = [32, 0], sizes = [32, 1], strides = [1, 1]} : vector<128x1xf32> to vector<32x1xf32>
    %28 = vector.extract_strided_slice %25 {offsets = [64, 0], sizes = [32, 1], strides = [1, 1]} : vector<128x1xf32> to vector<32x1xf32>
    %29 = vector.extract_strided_slice %25 {offsets = [96, 0], sizes = [32, 1], strides = [1, 1]} : vector<128x1xf32> to vector<32x1xf32>
    %30 = arith.divf %28, %26 : vector<32x1xf32>
    %31 = arith.divf %29, %27 : vector<32x1xf32>
    %32 = arith.subf %30, %31 : vector<32x1xf32>
    %33 = vector.shape_cast %32 : vector<32x1xf32> to vector<1x32x1xf32>
    %cst_11 = arith.constant dense<0.000000e+00> : vector<1xf32>
    %34 = vector.multi_reduction <add>, %33, %cst_11 [1, 2] : vector<1x32x1xf32> to vector<1xf32>
    %35 = vector.shape_cast %34 : vector<1xf32> to vector<1x1x1xf32>
    %36 = vector.extract %35[0, 0, 0] : f32 from vector<1x1x1xf32>
    %c0_12 = arith.constant 0 : index
    %c0_13 = arith.constant 0 : index
    %37 = memref.load %arg8[%c0_12, %c0_13] : memref<1x1xf32, #tpu.memory_space<smem>>
    memref.store %36, %arg8[%c0_12, %c0_13] : memref<1x1xf32, #tpu.memory_space<smem>>
    %c0_14 = arith.constant 0 : index
    %c0_15 = arith.constant 0 : index
    %38 = vector.load %arg2[%c0_14, %c0_15] : memref<2x256xf32, #tpu.memory_space<vmem>>, vector<1x256xf32>
    %c1 = arith.constant 1 : index
    %c0_16 = arith.constant 0 : index
    %39 = vector.load %arg2[%c1, %c0_16] : memref<2x256xf32, #tpu.memory_space<vmem>>, vector<1x256xf32>
    %40 = arith.mulf %38, %38 : vector<1x256xf32>
    %41 = arith.mulf %39, %39 : vector<1x256xf32>
    %42 = arith.addf %40, %41 : vector<1x256xf32>
    %c0_17 = arith.constant 0 : index
    %c0_18 = arith.constant 0 : index
    %43 = vector.load %arg3[%c0_17, %c0_18] : memref<8x256xf32, #tpu.memory_space<vmem>>, vector<8x256xf32>
    %cst_19 = arith.constant dense<0.000000e+00> : vector<1x8xf32>
    %44 = tpu.matmul %42, %43, %cst_19 {dimension_numbers = #tpu.dot_dimension_numbers<[1], [1], [0], [0], [0, 0, 1, 0], [], []>} : vector<1x256xf32>, vector<8x256xf32>, vector<1x8xf32> -> vector<1x8xf32>
    %c0_20 = arith.constant 0 : index
    %c0_21 = arith.constant 0 : index
    %45 = vector.load %arg9[%c0_20, %c0_21] : memref<1x8xf32, #tpu.memory_space<vmem>>, vector<1x8xf32>
    tpu.vector_store %arg9[%c0_20, %c0_21], %44 {strides = array<i32>} : memref<1x8xf32, #tpu.memory_space<vmem>>, vector<1x8xf32>,
    %c0_22 = arith.constant 0 : index
    %c0_23 = arith.constant 0 : index
    %46 = memref.load %arg5[%c0_22, %c0_23] : memref<1x1xf32, #tpu.memory_space<smem>>
    %cst_24 = arith.constant 5.000000e-01 : f32
    %47 = arith.mulf %cst_24, %46 : f32
    %48 = vector.broadcast %47 : f32 to vector<1x8xf32>
    %49 = arith.mulf %48, %44 : vector<1x8xf32>
    %50 = arith.mulf %49, %44 : vector<1x8xf32>
    %51 = arith.addf %44, %50 : vector<1x8xf32>
    %c0_25 = arith.constant 0 : index
    %c0_26 = arith.constant 0 : index
    %52 = vector.load %arg10[%c0_25, %c0_26] : memref<1x8xf32, #tpu.memory_space<vmem>>, vector<1x8xf32>
    tpu.vector_store %arg10[%c0_25, %c0_26], %51 {strides = array<i32>} : memref<1x8xf32, #tpu.memory_space<vmem>>, vector<1x8xf32>,
    %c0_27 = arith.constant 0 : index
    %c0_28 = arith.constant 0 : index
    %53 = vector.load %arg4[%c0_27, %c0_28] : memref<1x8xf32, #tpu.memory_space<vmem>>, vector<1x8xf32>
    %54 = arith.mulf %53, %51 : vector<1x8xf32>
    %55 = vector.shape_cast %54 : vector<1x8xf32> to vector<1x1x8xf32>
    %cst_29 = arith.constant dense<0.000000e+00> : vector<1xf32>
    %56 = vector.multi_reduction <add>, %55, %cst_29 [1, 2] : vector<1x1x8xf32> to vector<1xf32>
    %57 = vector.shape_cast %56 : vector<1xf32> to vector<1x1x1xf32>
    %58 = vector.extract %57[0, 0, 0] : f32 from vector<1x1x1xf32>
    %59 = arith.addf %36, %58 : f32
    %c0_30 = arith.constant 0 : index
    %c0_31 = arith.constant 0 : index
    %60 = memref.load %arg7[%c0_30, %c0_31] : memref<1x1xf32, #tpu.memory_space<smem>>
    memref.store %59, %arg7[%c0_30, %c0_31] : memref<1x1xf32, #tpu.memory_space<smem>>
    return
  }
}

</mosaic_0001>

<llo_original>
// kernel: place_model_forward.1
$region0: #{place_model_forward.1}
  #allocation0 [shape = 'u32[]', space=smem, size = 0x4, offset = 0x4, fixed_abs, tag = 'smem constant byte address 0x4 - core index']
  #allocation1 [shape = 'u32[72,128]{1,0:T(1,128)}', space=vmem, size = 0x9000, scoped, tag = 'internal scratch']
  #allocation2 [shape = 'f32[1,1]{1,0:T(1,128)S(6)}', space=smem, size = 0x200, scoped, tag = 'scoped memory for place_model_forward.1']
  #allocation3 [shape = 'f32[1,1]{1,0:T(1,128)S(6)}', space=smem, size = 0x200, scoped, tag = 'scoped memory for place_model_forward.1']
  %s0 = inlined_call_operand.vmem [shape: f32[32,128], index: 0, kind: input, shape index: {}]
  %s1 = inlined_call_operand.vmem [shape: f32[32,128], index: 1, kind: input, shape index: {}]
  %s2 = inlined_call_operand.vmem [shape: f32[2,256], index: 2, kind: input, shape index: {}]
  %s3 = inlined_call_operand.vmem [shape: f32[8,256], index: 3, kind: input, shape index: {}]
  %s4 = inlined_call_operand.vmem [shape: f32[1,8], index: 4, kind: input, shape index: {}]
  %s5 = inlined_call_operand.<no memory space> [shape: f32[1,1], index: 5, kind: input, shape index: {}]
  %s6 = inlined_call_operand.<no memory space> [shape: f32[1,1], index: 6, kind: input, shape index: {}]
  %s7 = inlined_call_operand.hbm [shape: f32[1,1], index: 7, kind: output, shape index: {0}]
  %s8 = inlined_call_operand.hbm [shape: f32[1,1], index: 8, kind: output, shape index: {1}]
  %s9 = inlined_call_operand.hbm [shape: f32[1,8], index: 9, kind: output, shape index: {2}]
  %s10 = inlined_call_operand.hbm [shape: f32[1,8], index: 10, kind: output, shape index: {3}]
  %11 = xla_tuple %s7, %s8, %s9, %s10
  %s12 = sld [smem:[#allocation0]]
  $region62: #{place_model_forward.1} parent=0
    _
  %s14 = ssub.s32 1, %s12
  %s15 = scalar_select 0, %s14, %s12
  %16 = sst [smem:[#allocation2]] %s5
  %17 = sst [smem:[#allocation3]] %s6
  $region1: #{place_model_forward.1} parent=0
    #allocation4 [shape = 'u8[512]{0}', space=smem, size = 0x200, scoped, tag = 'output window, operand 0, single buffered']
    #allocation5 [shape = 's32[1]{0}', space=sflag, size = 0x4, scoped, tag = 'scoped memory for place_model_forward.1']
    #allocation6 [shape = 's32[1]{0}', space=sflag, size = 0x4, scoped, tag = 'scoped memory for place_model_forward.1']
    #allocation7 [shape = 'u8[512]{0}', space=smem, size = 0x200, scoped, tag = 'output window, operand 1, single buffered']
    #allocation8 [shape = 's32[1]{0}', space=sflag, size = 0x4, scoped, tag = 'scoped memory for place_model_forward.1']
    #allocation9 [shape = 'u8[512]{0}', space=vmem, size = 0x400, scoped, tag = 'output window, operand 2, single buffered']
    #allocation10 [shape = 'u8[512]{0}', space=vmem, size = 0x400, scoped, tag = 'output window, operand 3, single buffered']
    #allocation11 [shape = 's32[1]{0}', space=sflag, size = 0x4, scoped, tag = 'scoped memory for place_model_forward.1']
    %18 = vsyncpa [#allocation6], 0
    %19 = vsyncpa [#allocation8], 0
    %20 = vsyncpa [#allocation5], 0
    %21 = vsyncpa [#allocation11], 0
    // Predicated region
    $region2: #{place_model_forward.1} parent=1 // pred_check
      _
    $region3: #{place_model_forward.1} parent=1 // pred_check_branch
      %23 = sbr.rel (0) target = $region5
    $region4: #{place_model_forward.1} parent=1 // pred_region
      _
    $region5: #{place_model_forward.1} parent=1 // pred_fallthru
      _
    // Predicated region
    $region6: #{place_model_forward.1} parent=1 // pred_check
      _
    $region7: #{place_model_forward.1} parent=1 // pred_check_branch
      %25 = sbr.rel (0) target = $region9
    $region8: #{place_model_forward.1} parent=1 // pred_region
      _
    $region9: #{place_model_forward.1} parent=1 // pred_fallthru
      _
    // Predicated region
    $region10: #{place_model_forward.1} parent=1 // pred_check
      _
    $region11: #{place_model_forward.1} parent=1 // pred_check_branch
      %27 = sbr.rel (0) target = $region13
    $region12: #{place_model_forward.1} parent=1 // pred_region
      _
    $region13: #{place_model_forward.1} parent=1 // pred_fallthru
      _
    // Predicated region
    $region14: #{place_model_forward.1} parent=1 // pred_check
      _
    $region15: #{place_model_forward.1} parent=1 // pred_check_branch
      %29 = sbr.rel (0) target = $region17
    $region16: #{place_model_forward.1} parent=1 // pred_region
      _
    $region17: #{place_model_forward.1} parent=1 // pred_fallthru
      _
    // Predicated region
    $region18: #{place_model_forward.1} parent=1 // pred_check
      _
    $region19: #{place_model_forward.1} parent=1 // pred_check_branch
      %31 = sbr.rel (0) target = $region21
    $region20: #{place_model_forward.1} parent=1 // pred_region
      _
    $region21: #{place_model_forward.1} parent=1 // pred_fallthru
      _
    // Predicated region
    $region22: #{place_model_forward.1} parent=1 // pred_check
      _
    $region23: #{place_model_forward.1} parent=1 // pred_check_branch
      %33 = sbr.rel (0) target = $region25
    $region24: #{place_model_forward.1} parent=1 // pred_region
      _
    $region25: #{place_model_forward.1} parent=1 // pred_fallthru
      _
    // Predicated region
    $region26: #{place_model_forward.1} parent=1 // pred_check
      _
    $region27: #{place_model_forward.1} parent=1 // pred_check_branch
      %35 = sbr.rel (0) target = $region29
    $region28: #{place_model_forward.1} parent=1 // pred_region
      _
    $region29: #{place_model_forward.1} parent=1 // pred_fallthru
      _
    %s36 = sld [smem:[#allocation3]]
    %v37 = vstv %s36
    %v38 = vrcp.pop %v37
    %v39 = vmul.f32 %v37, %v38
    %v40 = vsub.f32 1.0, %v39
    %v41 = vmul.f32 %v38, %v40
    %v42 = vadd.f32 %v38, %v41
    %vm43 = vweird.f32 %v37
    %vm44 = vweird.f32 %v38
    %vm45 = vmor %vm43, %vm44
    %v46 = vsel %vm45, %v38, %v42
    %v47 = vand.u32 2147483647, %v37
    %vm48 = vcmp.eq.f32.partialorder %v47, 8.507059e+37
    %v49 = vand.u32 %v37, 2147483648
    %v50 = vor.u32 1.1754944e-38, %v49
    %v51 = vsel %vm48, %v50, %v46
    %s52 = vtos %v51
    %v53 = vld [vmem:[%s0] sm:$0xff]
    %v54 = vld [vmem:[%s0 + $0x8] sm:$0xff]
    %v55 = vld [vmem:[%s0 + $0x10] sm:$0xff]
    %v56 = vld [vmem:[%s0 + $0x18] sm:$0xff]
    %v57 = vld [vmem:[%s1] sm:$0xff]
    %v58 = vld [vmem:[%s1 + $0x8] sm:$0xff]
    %v59 = vld [vmem:[%s1 + $0x10] sm:$0xff]
    %v60 = vld [vmem:[%s1 + $0x18] sm:$0xff]
    %vm61 = vcmp.gt.f32.partialorder %v57, 0.0
    %vm62 = vcmp.gt.f32.partialorder %v58, 0.0
    %vm63 = vcmp.gt.f32.partialorder %v59, 0.0
    %vm64 = vcmp.gt.f32.partialorder %v60, 0.0
    %v65 = vsub.f32 0.0, %v53
    %v66 = vsub.f32 0.0, %v54
    %v67 = vsub.f32 0.0, %v55
    %v68 = vsub.f32 0.0, %v56
    %v69 = vsel %vm61, %v53, -1e+30
    %v70 = vsel %vm62, %v54, -1e+30
    %v71 = vsel %vm63, %v55, -1e+30
    %v72 = vsel %vm64, %v56, -1e+30
    %v73 = vsel %vm61, %v65, -1e+30
    %v74 = vsel %vm62, %v66, -1e+30
    %v75 = vsel %vm63, %v67, -1e+30
    %v76 = vsel %vm64, %v68, -1e+30
    %77 = vmax.xlane.f32.xlu0 %v69
    %v78 = vpop.xlane.xlu0 %77
    %79 = vmax.xlane.f32.xlu0 %v70
    %v80 = vpop.xlane.xlu0 %79
    %81 = vmax.xlane.f32.xlu0 %v71
    %v82 = vpop.xlane.xlu0 %81
    %83 = vmax.xlane.f32.xlu0 %v72
    %v84 = vpop.xlane.xlu0 %83
    %85 = vmax.xlane.f32.xlu0 %v73
    %v86 = vpop.xlane.xlu0 %85
    %87 = vmax.xlane.f32.xlu0 %v74
    %v88 = vpop.xlane.xlu0 %87
    %89 = vmax.xlane.f32.xlu0 %v75
    %v90 = vpop.xlane.xlu0 %89
    %91 = vmax.xlane.f32.xlu0 %v76
    %v92 = vpop.xlane.xlu0 %91
    %v93 = vsub.f32 %v53, %v78
    %v94 = vsub.f32 %v54, %v80
    %v95 = vsub.f32 %v55, %v82
    %v96 = vsub.f32 %v56, %v84
    %v97 = vsub.f32 %v65, %v86
    %v98 = vsub.f32 %v66, %v88
    %v99 = vsub.f32 %v67, %v90
    %v100 = vsub.f32 %v68, %v92
    %v101 = vstv %s52
    %v102 = vmul.f32 %v93, %v101
    %v103 = vmul.f32 %v94, %v101
    %v104 = vmul.f32 %v95, %v101
    %v105 = vmul.f32 %v96, %v101
    %v106 = vmul.f32 %v97, %v101
    %v107 = vmul.f32 %v98, %v101
    %v108 = vmul.f32 %v99, %v101
    %v109 = vmul.f32 %v100, %v101
    %v110 = vsel %vm61, %v102, -1e+30
    %v111 = vsel %vm62, %v103, -1e+30
    %v112 = vsel %vm63, %v104, -1e+30
    %v113 = vsel %vm64, %v105, -1e+30
    %v114 = vsel %vm61, %v106, -1e+30
    %v115 = vsel %vm62, %v107, -1e+30
    %v116 = vsel %vm63, %v108, -1e+30
    %v117 = vsel %vm64, %v109, -1e+30
    %v118 = vmul.f32 %v110, 1.442695
    %v119 = vpow.pop %v118
    %v120 = vmul.f32 %v111, 1.442695
    %v121 = vpow.pop %v120
    %v122 = vmul.f32 %v112, 1.442695
    %v123 = vpow.pop %v122
    %v124 = vmul.f32 %v113, 1.442695
    %v125 = vpow.pop %v124
    %v126 = vmul.f32 %v114, 1.442695
    %v127 = vpow.pop %v126
    %v128 = vmul.f32 %v115, 1.442695
    %v129 = vpow.pop %v128
    %v130 = vmul.f32 %v116, 1.442695
    %v131 = vpow.pop %v130
    %v132 = vmul.f32 %v117, 1.442695
    %v133 = vpow.pop %v132
    %v134 = vmul.f32 %v53, %v119
    %v135 = vmul.f32 %v54, %v121
    %v136 = vmul.f32 %v55, %v123
    %v137 = vmul.f32 %v56, %v125
    %v138 = vmul.f32 %v53, %v127
    %v139 = vmul.f32 %v54, %v129
    %v140 = vmul.f32 %v55, %v131
    %v141 = vmul.f32 %v56, %v133
    %142 = vadd.xlane.f32.xlu0 %v119
    %v143 = vpop.xlane.xlu0 %142
    %144 = vadd.xlane.f32.xlu0 %v121
    %v145 = vpop.xlane.xlu0 %144
    %146 = vadd.xlane.f32.xlu0 %v123
    %v147 = vpop.xlane.xlu0 %146
    %148 = vadd.xlane.f32.xlu0 %v125
    %v149 = vpop.xlane.xlu0 %148
    %150 = vadd.xlane.f32.xlu0 %v127
    %v151 = vpop.xlane.xlu0 %150
    %152 = vadd.xlane.f32.xlu0 %v129
    %v153 = vpop.xlane.xlu0 %152
    %154 = vadd.xlane.f32.xlu0 %v131
    %v155 = vpop.xlane.xlu0 %154
    %156 = vadd.xlane.f32.xlu0 %v133
    %v157 = vpop.xlane.xlu0 %156
    %158 = vadd.xlane.f32.xlu0 %v134
    %v159 = vpop.xlane.xlu0 %158
    %160 = vadd.xlane.f32.xlu0 %v135
    %v161 = vpop.xlane.xlu0 %160
    %162 = vadd.xlane.f32.xlu0 %v136
    %v163 = vpop.xlane.xlu0 %162
    %164 = vadd.xlane.f32.xlu0 %v137
    %v165 = vpop.xlane.xlu0 %164
    %166 = vadd.xlane.f32.xlu0 %v138
    %v167 = vpop.xlane.xlu0 %166
    %168 = vadd.xlane.f32.xlu0 %v139
    %v169 = vpop.xlane.xlu0 %168
    %170 = vadd.xlane.f32.xlu0 %v140
    %v171 = vpop.xlane.xlu0 %170
    %172 = vadd.xlane.f32.xlu0 %v141
    %v173 = vpop.xlane.xlu0 %172
    %v174 = vrcp.pop %v143
    %v175 = vmul.f32 %v143, %v174
    %v176 = vsub.f32 1.0, %v175
    %v177 = vmul.f32 %v174, %v176
    %v178 = vadd.f32 %v174, %v177
    %vm179 = vweird.f32 %v143
    %vm180 = vweird.f32 %v174
    %vm181 = vmor %vm179, %vm180
    %v182 = vsel %vm181, %v174, %v178
    %v183 = vand.u32 2147483647, %v143
    %vm184 = vcmp.eq.f32.partialorder %v183, 8.507059e+37
    %v185 = vand.u32 %v143, 2147483648
    %v186 = vor.u32 1.1754944e-38, %v185
    %v187 = vsel %vm184, %v186, %v182
    %v188 = vmul.f32 %v159, %v187
    %v189 = vrcp.pop %v145
    %v190 = vmul.f32 %v145, %v189
    %v191 = vsub.f32 1.0, %v190
    %v192 = vmul.f32 %v189, %v191
    %v193 = vadd.f32 %v189, %v192
    %vm194 = vweird.f32 %v145
    %vm195 = vweird.f32 %v189
    %vm196 = vmor %vm194, %vm195
    %v197 = vsel %vm196, %v189, %v193
    %v198 = vand.u32 2147483647, %v145
    %vm199 = vcmp.eq.f32.partialorder %v198, 8.507059e+37
    %v200 = vand.u32 %v145, 2147483648
    %v201 = vor.u32 1.1754944e-38, %v200
    %v202 = vsel %vm199, %v201, %v197
    %v203 = vmul.f32 %v161, %v202
    %v204 = vrcp.pop %v147
    %v205 = vmul.f32 %v147, %v204
    %v206 = vsub.f32 1.0, %v205
    %v207 = vmul.f32 %v204, %v206
    %v208 = vadd.f32 %v204, %v207
    %vm209 = vweird.f32 %v147
    %vm210 = vweird.f32 %v204
    %vm211 = vmor %vm209, %vm210
    %v212 = vsel %vm211, %v204, %v208
    %v213 = vand.u32 2147483647, %v147
    %vm214 = vcmp.eq.f32.partialorder %v213, 8.507059e+37
    %v215 = vand.u32 %v147, 2147483648
    %v216 = vor.u32 1.1754944e-38, %v215
    %v217 = vsel %vm214, %v216, %v212
    %v218 = vmul.f32 %v163, %v217
    %v219 = vrcp.pop %v149
    %v220 = vmul.f32 %v149, %v219
    %v221 = vsub.f32 1.0, %v220
    %v222 = vmul.f32 %v219, %v221
    %v223 = vadd.f32 %v219, %v222
    %vm224 = vweird.f32 %v149
    %vm225 = vweird.f32 %v219
    %vm226 = vmor %vm224, %vm225
    %v227 = vsel %vm226, %v219, %v223
    %v228 = vand.u32 2147483647, %v149
    %vm229 = vcmp.eq.f32.partialorder %v228, 8.507059e+37
    %v230 = vand.u32 %v149, 2147483648
    %v231 = vor.u32 1.1754944e-38, %v230
    %v232 = vsel %vm229, %v231, %v227
    %v233 = vmul.f32 %v165, %v232
    %v234 = vrcp.pop %v151
    %v235 = vmul.f32 %v151, %v234
    %v236 = vsub.f32 1.0, %v235
    %v237 = vmul.f32 %v234, %v236
    %v238 = vadd.f32 %v234, %v237
    %vm239 = vweird.f32 %v151
    %vm240 = vweird.f32 %v234
    %vm241 = vmor %vm239, %vm240
    %v242 = vsel %vm241, %v234, %v238
    %v243 = vand.u32 2147483647, %v151
    %vm244 = vcmp.eq.f32.partialorder %v243, 8.507059e+37
    %v245 = vand.u32 %v151, 2147483648
    %v246 = vor.u32 1.1754944e-38, %v245
    %v247 = vsel %vm244, %v246, %v242
    %v248 = vmul.f32 %v167, %v247
    %v249 = vrcp.pop %v153
    %v250 = vmul.f32 %v153, %v249
    %v251 = vsub.f32 1.0, %v250
    %v252 = vmul.f32 %v249, %v251
    %v253 = vadd.f32 %v249, %v252
    %vm254 = vweird.f32 %v153
    %vm255 = vweird.f32 %v249
    %vm256 = vmor %vm254, %vm255
    %v257 = vsel %vm256, %v249, %v253
    %v258 = vand.u32 2147483647, %v153
    %vm259 = vcmp.eq.f32.partialorder %v258, 8.507059e+37
    %v260 = vand.u32 %v153, 2147483648
    %v261 = vor.u32 1.1754944e-38, %v260
    %v262 = vsel %vm259, %v261, %v257
    %v263 = vmul.f32 %v169, %v262
    %v264 = vrcp.pop %v155
    %v265 = vmul.f32 %v155, %v264
    %v266 = vsub.f32 1.0, %v265
    %v267 = vmul.f32 %v264, %v266
    %v268 = vadd.f32 %v264, %v267
    %vm269 = vweird.f32 %v155
    %vm270 = vweird.f32 %v264
    %vm271 = vmor %vm269, %vm270
    %v272 = vsel %vm271, %v264, %v268
    %v273 = vand.u32 2147483647, %v155
    %vm274 = vcmp.eq.f32.partialorder %v273, 8.507059e+37
    %v275 = vand.u32 %v155, 2147483648
    %v276 = vor.u32 1.1754944e-38, %v275
    %v277 = vsel %vm274, %v276, %v272
    %v278 = vmul.f32 %v171, %v277
    %v279 = vrcp.pop %v157
    %v280 = vmul.f32 %v157, %v279
    %v281 = vsub.f32 1.0, %v280
    %v282 = vmul.f32 %v279, %v281
    %v283 = vadd.f32 %v279, %v282
    %vm284 = vweird.f32 %v157
    %vm285 = vweird.f32 %v279
    %vm286 = vmor %vm284, %vm285
    %v287 = vsel %vm286, %v279, %v283
    %v288 = vand.u32 2147483647, %v157
    %vm289 = vcmp.eq.f32.partialorder %v288, 8.507059e+37
    %v290 = vand.u32 %v157, 2147483648
    %v291 = vor.u32 1.1754944e-38, %v290
    %v292 = vsel %vm289, %v291, %v287
    %v293 = vmul.f32 %v173, %v292
    %v294 = vsub.f32 %v188, %v248
    %v295 = vsub.f32 %v203, %v263
    %v296 = vsub.f32 %v218, %v278
    %v297 = vsub.f32 %v233, %v293
    %vm298 = vcmask 7168
    %v299 = vsel %vm298, %v294, 0.0
    %v300 = vsel %vm298, %v295, 0.0
    %v301 = vadd.f32 %v299, %v300
    %v302 = vsel %vm298, %v296, 0.0
    %v303 = vadd.f32 %v301, %v302
    %v304 = vsel %vm298, %v297, 0.0
    %v305 = vadd.f32 %v303, %v304
    %306 = vadd.xlane.f32.xlu0 %v305
    %v307 = vpop.xlane.xlu0 %306
    %v308 = vrot.slane %v307, 4
    %v309 = vadd.f32 %v307, %v308
    %v310 = vrot.slane %v309, 2
    %v311 = vadd.f32 %v309, %v310
    %v312 = vrot.slane %v311, 1
    %v313 = vadd.f32 %v311, %v312
    %s314 = vtos %v313
    %s315 = scalar_lea.smem [#allocation7], 0
    %316 = sst [smem:[%s315]] %s314
    %v317 = vld [vmem:[%s2] ss:$2 sm:$0x3]
    %s318 = scalar_lea.vmem %s2, 1
    %v319 = vld [vmem:[%s318] ss:$2 sm:$0x3]
    %v320 = vmul.f32 %v317, %v317
    %v321 = vmul.f32 %v319, %v319
    %v322 = vadd.f32 %v320, %v321
    %v323 = vld [vmem:[%s3] sm:$0xff]
    %v324 = vld [vmem:[%s3 + $0x8] sm:$0xff]
    %v326 = vperm.slane %v322, 0
    %v327 = vperm.slane %v322, 1
    %330 = vmatpush.xpose.msra.mxu0 0.0
    %331 = vmatpush.xpose.msra.mxu0 0.0
    %332 = vmatpush.xpose.msra.mxu0 0.0
    %333 = vmatpush.xpose.msra.mxu0 0.0
    %334 = vmatpush.xpose.msra.mxu0 0.0
    %335 = vmatpush.xpose.msra.mxu0 0.0
    %336 = vmatpush.xpose.msra.mxu0 0.0
    %337 = vmatpush.xpose.msra.mxu0 0.0
    %338 = vmatpush.xpose.msra.mxu0 0.0
    %339 = vmatpush.xpose.msra.mxu0 0.0
    %340 = vmatpush.xpose.msra.mxu0 0.0
    %341 = vmatpush.xpose.msra.mxu0 0.0
    %342 = vmatpush.xpose.msra.mxu0 0.0
    %343 = vmatpush.xpose.msra.mxu0 0.0
    %344 = vmatpush.xpose.msra.mxu0 0.0
    %345 = vmatpush.xpose.msra.mxu0 %v323
    %346 = vmatmul.f32.gmra.mxu0 %v326
    %v347 = vpop.f32.mrf.mxu0
    %v348 = vadd.f32 0.0, %v347
    %349 = vdwg.mxu0
    %350 = vmatpush.xpose.msra.mxu0 0.0
    %351 = vmatpush.xpose.msra.mxu0 0.0
    %352 = vmatpush.xpose.msra.mxu0 0.0
    %353 = vmatpush.xpose.msra.mxu0 0.0
    %354 = vmatpush.xpose.msra.mxu0 0.0
    %355 = vmatpush.xpose.msra.mxu0 0.0
    %356 = vmatpush.xpose.msra.mxu0 0.0
    %357 = vmatpush.xpose.msra.mxu0 0.0
    %358 = vmatpush.xpose.msra.mxu0 0.0
    %359 = vmatpush.xpose.msra.mxu0 0.0
    %360 = vmatpush.xpose.msra.mxu0 0.0
    %361 = vmatpush.xpose.msra.mxu0 0.0
    %362 = vmatpush.xpose.msra.mxu0 0.0
    %363 = vmatpush.xpose.msra.mxu0 0.0
    %364 = vmatpush.xpose.msra.mxu0 0.0
    %365 = vmatpush.xpose.msra.mxu0 %v324
    %366 = vmatmul.f32.gmra.mxu0 %v327
    %v367 = vpop.f32.mrf.mxu0
    %v368 = vadd.f32 %v348, %v367
    %369 = vdwg.mxu0
    %vm370 = vcmask 57344
    %371 = vst.msk [vmem:[#allocation9] sm:$0x1] %vm370, %v368
    %s372 = sld [smem:[#allocation2]]
    %s373 = smul.f32 %s372, 0.5
    %v374 = vstv %s373
    %v375 = vmul.f32 %v374, %v368
    %v376 = vmul.f32 %v375, %v368
    %v377 = vadd.f32 %v368, %v376
    %378 = vst.msk [vmem:[#allocation10] sm:$0x1] %vm370, %v377
    %v379 = vld [vmem:[%s4] sm:$0x1]
    %v380 = vmul.f32 %v379, %v377
    %v381 = vsel %vm370, %v380, 0.0
    %382 = vadd.xlane.f32.xlu0 %v381
    %v383 = vpop.xlane.xlu0 %382
    %v384 = vrot.slane %v383, 4
    %v385 = vadd.f32 %v383, %v384
    %v386 = vrot.slane %v385, 2
    %v387 = vadd.f32 %v385, %v386
    %v388 = vrot.slane %v387, 1
    %v389 = vadd.f32 %v387, %v388
    %s390 = vtos %v389
    %s391 = sadd.f32 %s314, %s390
    %s392 = scalar_lea.smem [#allocation4], 0
    %393 = sst [smem:[%s392]] %s391
    // Predicated region
    $region30: #{place_model_forward.1} parent=1 // pred_check
      _
    $region31: #{place_model_forward.1} parent=1 // pred_check_branch
      %395 = sbr.rel (0) target = $region33
    $region32: #{place_model_forward.1} parent=1 // pred_region
      %397 = vsyncadd [#allocation6], 0
      %s399 = sshll.u32 %s7, 4
      %s400 = int_to_ptr.hbm [resolvable:$true] %s399
      %402 = dma.smem_to_hbm [#allocation4], 16, %s400, [#allocation6]
    $region33: #{place_model_forward.1} parent=1 // pred_fallthru
      _
    // Predicated region
    $region34: #{place_model_forward.1} parent=1 // pred_check
      _
    $region35: #{place_model_forward.1} parent=1 // pred_check_branch
      %404 = sbr.rel (0) target = $region37
    $region36: #{place_model_forward.1} parent=1 // pred_region
      %406 = vsyncadd [#allocation8], 0
      %s408 = sshll.u32 %s8, 4
      %s409 = int_to_ptr.hbm [resolvable:$true] %s408
      %411 = dma.smem_to_hbm [#allocation7], 16, %s409, [#allocation8]
    $region37: #{place_model_forward.1} parent=1 // pred_fallthru
      _
    // Predicated region
    $region38: #{place_model_forward.1} parent=1 // pred_check
      _
    $region39: #{place_model_forward.1} parent=1 // pred_check_branch
      %413 = sbr.rel (0) target = $region41
    $region40: #{place_model_forward.1} parent=1 // pred_region
      %415 = vsyncadd [#allocation5], 0
      %s417 = sshll.u32 [#allocation9], 4
      %s418 = int_to_ptr.vmem [resolvable:$true] %s417
      %s419 = sshll.u32 %s9, 4
      %s420 = int_to_ptr.hbm [resolvable:$true] %s419
      %422 = dma.vmem_to_hbm [thread:$0]  %s418, 16, %s420, [#allocation5]
    $region41: #{place_model_forward.1} parent=1 // pred_fallthru
      _
    // Predicated region
    $region42: #{place_model_forward.1} parent=1 // pred_check
      _
    $region43: #{place_model_forward.1} parent=1 // pred_check_branch
      %424 = sbr.rel (0) target = $region45
    $region44: #{place_model_forward.1} parent=1 // pred_region
      %426 = vsyncadd [#allocation11], 0
      %s428 = sshll.u32 [#allocation10], 4
      %s429 = int_to_ptr.vmem [resolvable:$true] %s428
      %s430 = sshll.u32 %s10, 4
      %s431 = int_to_ptr.hbm [resolvable:$true] %s430
      %433 = dma.vmem_to_hbm [thread:$0]  %s429, 16, %s431, [#allocation11]
    $region45: #{place_model_forward.1} parent=1 // pred_fallthru
      _
    // Predicated region
    $region46: #{place_model_forward.1} parent=1 // pred_check
      _
    $region47: #{place_model_forward.1} parent=1 // pred_check_branch
      %435 = sbr.rel (0) target = $region49
    $region48: #{place_model_forward.1} parent=1 // pred_region
      %437 = dma.done [#allocation6], 16
    $region49: #{place_model_forward.1} parent=1 // pred_fallthru
      _
    // Predicated region
    $region50: #{place_model_forward.1} parent=1 // pred_check
      _
    $region51: #{place_model_forward.1} parent=1 // pred_check_branch
      %439 = sbr.rel (0) target = $region53
    $region52: #{place_model_forward.1} parent=1 // pred_region
      %441 = dma.done [#allocation8], 16
    $region53: #{place_model_forward.1} parent=1 // pred_fallthru
      _
    // Predicated region
    $region54: #{place_model_forward.1} parent=1 // pred_check
      _
    $region55: #{place_model_forward.1} parent=1 // pred_check_branch
      %443 = sbr.rel (0) target = $region57
    $region56: #{place_model_forward.1} parent=1 // pred_region
      %445 = dma.done [#allocation5], 16
    $region57: #{place_model_forward.1} parent=1 // pred_fallthru
      _
    // Predicated region
    $region58: #{place_model_forward.1} parent=1 // pred_check
      _
    $region59: #{place_model_forward.1} parent=1 // pred_check_branch
      %447 = sbr.rel (0) target = $region61
    $region60: #{place_model_forward.1} parent=1 // pred_region
      %449 = dma.done [#allocation11], 16
    $region61: #{place_model_forward.1} parent=1 // pred_fallthru
      _
    %450 = sfence
    %451 = vsyncpa [#allocation5], 1
    %452 = vsyncpa [#allocation11], 1
    %453 = vsyncpa [#allocation6], 1
    %454 = vsyncpa [#allocation8], 1

</llo_original>
